<compile_context>
chip_gen: v5e
topology: v5e:2x2
jax: 0.10.0
libtpu: 0.0.40
codegen_flags: <defaults>
</compile_context>

<pallas_src>
import jax
import jax.numpy as jnp
from jax.experimental import pallas as pl
from jax.experimental.pallas import tpu as pltpu


def _critic_kernel(s_ref, a_ref, w1_ref, b1_ref,
                   w2s_ref, w2a_ref, b2_ref,
                   w3r_ref, b3_ref, o_ref):
    # fcs1: cast f32 state to bf16 at the MXU input, f32 accumulate, + b1.
    xs = jnp.dot(s_ref[...].astype(jnp.bfloat16), w1_ref[...],
                 preferred_element_type=jnp.float32) + b1_ref[...]
    # dropout(0.2) -> identity at inference.
    # relu fused with the bf16 downcast (only x_bf16 is kept, never a f32 x).
    x = jnp.maximum(xs, 0.0).astype(jnp.bfloat16)
    # fc2 on concat([x, action]) == x @ W2_s + action @ W2_a  (f32 accumulate)
    h = (jnp.dot(x, w2s_ref[...], preferred_element_type=jnp.float32)
         + jnp.dot(a_ref[...].astype(jnp.bfloat16), w2a_ref[...],
                   preferred_element_type=jnp.float32)
         + b2_ref[...])
    h = jnp.maximum(h, 0.0)                                    # relu (f32, VPU)
    # fc_out as VPU multiply + lane reduction (avoids an N=1 MXU pass);
    # keepdims=True stores directly as a (tb, 1) column — no relayout.
    q = jnp.sum(h * w3r_ref[...], axis=-1, keepdims=True) + b3_ref[0]
    o_ref[...] = q.astype(o_ref.dtype)


def _pick_tb(B):
    """Batch rows per grid step.

    Small B: one exact tile (full-dim block is always layout-legal).
    Mid B:   ~2 tiles so v7x's two TensorCores both get work.
    Large B: 512-row tiles to amortize per-step overhead; VMEM stays tiny.
    """
    if B < 256:
        return B
    if B <= 1024:
        return max(128, ((pl.cdiv(B, 2) + 127) // 128) * 128)
    return 512


def critic_forward(state, action, params, *, tb=None):
    """state: [B,S] f32, action: [B,A] f32 -> Q: [B,1] f32."""
    w1, b1, w2s, w2a, b2, w3r, b3 = params
    B, S = state.shape
    A = action.shape[1]
    H1 = w1.shape[1]
    H2 = w2s.shape[1]

    if tb is None:
        tb = _pick_tb(B)
    G = pl.cdiv(B, tb)

    cost = pl.CostEstimate(
        flops=2 * B * (S * H1 + (H1 + A) * H2 + H2),
        transcendentals=0,
        bytes_accessed=int(
            (state.size + action.size) * 4                       # f32 inputs
            + (w1.size + w2s.size + w2a.size) * 2                # bf16 weights
            + (b1.size + b2.size + w3r.size + b3.size) * 4       # f32 small
            + B * 4),                                            # f32 output
    )

    row = lambda g: (g, 0)        # batch-tiled arrays (pipelined per grid step)
    pinned = lambda g: (0, 0)     # weights: same block -> VMEM-resident

    out = pl.pallas_call(
        _critic_kernel,
        out_shape=jax.ShapeDtypeStruct((B, 1), jnp.float32),
        grid=(G,),
        in_specs=[
            pl.BlockSpec((tb, S), row),        # state (f32, cast in-kernel)
            pl.BlockSpec((tb, A), row),        # action (f32, cast in-kernel)
            pl.BlockSpec((S, H1), pinned),     # W1   bf16
            pl.BlockSpec((1, H1), pinned),     # b1   f32
            pl.BlockSpec((H1, H2), pinned),    # W2_s bf16
            pl.BlockSpec((A, H2), pinned),     # W2_a bf16 (true A, no padding)
            pl.BlockSpec((1, H2), pinned),     # b2   f32
            pl.BlockSpec((1, H2), pinned),     # W3 row f32 (VPU reduce)
            pl.BlockSpec(memory_space=pltpu.MemorySpace.SMEM),   # b3 scalar
        ],
        out_specs=pl.BlockSpec((tb, 1), row),
        compiler_params=pltpu.CompilerParams(
            dimension_semantics=("parallel",)),
        cost_estimate=cost,
    )(state, action, w1, b1, w2s, w2a, b2, w3r, b3)

    return out


# ----------------------------------------------------------------------------
# deterministic parameter init (mirrors layer_init: orthogonal weight, zero bias)
# ----------------------------------------------------------------------------
def _orthogonal(key, in_dim, out_dim, scale=1.0):
    """Orthogonal init, returned already in [in, out] (y = x @ W) layout."""
    big, small = max(in_dim, out_dim), min(in_dim, out_dim)
    a = jax.random.normal(key, (big, small), dtype=jnp.float32)
    q, _ = jnp.linalg.qr(a)                 # orthonormal columns
    w = q if in_dim >= out_dim else q.T     # -> [in, out]
    return (scale * w).astype(jnp.float32)


def make_params(key, state_size, action_size, fcs1_units=512, fc2_units=256):
    """Kernel-layout params (same math as torch layer_init'd Linears).

    Weights are stored transposed vs torch.nn.Linear ([in, out], y = x@W + b);
    matmul weights are bf16; W2's action slice keeps its true row count; W3 is
    stored as a [1, fc2_units] f32 row for the VPU reduce.
    """
    k1, k2, k3 = jax.random.split(key, 3)

    w1 = _orthogonal(k1, state_size, fcs1_units).astype(jnp.bfloat16)     # [S,H1]
    b1 = jnp.zeros((1, fcs1_units), jnp.float32)

    w2 = _orthogonal(k2, fcs1_units + action_size, fc2_units)             # [H1+A,H2]
    w2s = w2[:fcs1_units].astype(jnp.bfloat16)                            # [H1,H2]
    w2a = w2[fcs1_units:].astype(jnp.bfloat16)                            # [A,H2]
    b2 = jnp.zeros((1, fc2_units), jnp.float32)

    w3 = _orthogonal(k3, fc2_units, 1)                                    # [H2,1]
    w3r = w3.T.astype(jnp.float32)                                        # [1,H2]
    b3 = jnp.zeros((1,), jnp.float32)
    return (w1, b1, w2s, w2a, b2, w3r, b3)


def reference_forward(state, action, params):
    """Pure-JAX reference (same bf16-operand / f32-accumulate math, concat split)."""
    w1, b1, w2s, w2a, b2, w3r, b3 = params
    xs = jnp.dot(state.astype(jnp.bfloat16), w1,
                 preferred_element_type=jnp.float32) + b1
    x = jnp.maximum(xs, 0.0).astype(jnp.bfloat16)   # dropout -> identity (eval)
    h = (jnp.dot(x, w2s, preferred_element_type=jnp.float32)
         + jnp.dot(action.astype(jnp.bfloat16), w2a,
                   preferred_element_type=jnp.float32)
         + b2)
    h = jnp.maximum(h, 0.0)
    return jnp.sum(h * w3r, axis=-1, keepdims=True) + b3[0]


if __name__ == "__main__":
    B, S, A = 8, 32, 8          # small (state, action) shapes for the demo
    key = jax.random.PRNGKey(0)
    ks, ka, kp = jax.random.split(key, 3)

    state = jax.random.normal(ks, (B, S), dtype=jnp.float32)
    action = jax.random.normal(ka, (B, A), dtype=jnp.float32)
    params = make_params(kp, S, A)

    q = critic_forward(state, action, params)
    q = jax.block_until_ready(q)

    q_ref = reference_forward(state, action, params)
    assert q.shape == (B, 1)
    assert jnp.allclose(q, q_ref, atol=1e-3, rtol=1e-3), (q, q_ref)

    print("KERNEL_OK")
</pallas_src>

<mosaic_0001>
module attributes {stable_mosaic.version = 11 : i64} {
  func.func @_critic_kernel(%arg0: i32, %arg1: memref<8x32xf32, #tpu.memory_space<vmem>>, %arg2: memref<8x8xf32, #tpu.memory_space<vmem>>, %arg3: memref<32x512xbf16, #tpu.memory_space<vmem>>, %arg4: memref<1x512xf32, #tpu.memory_space<vmem>>, %arg5: memref<512x256xbf16, #tpu.memory_space<vmem>>, %arg6: memref<8x256xbf16, #tpu.memory_space<vmem>>, %arg7: memref<1x256xf32, #tpu.memory_space<vmem>>, %arg8: memref<1x256xf32, #tpu.memory_space<vmem>>, %arg9: memref<1xf32, #tpu.memory_space<smem>>, %arg10: memref<8x1xf32, #tpu.memory_space<vmem>>) attributes {dimension_semantics = [#tpu.dimension_semantics<parallel>], iteration_bounds = array<i64: 1>, scalar_prefetch = 0 : i64, scratch_operands = 0 : i64, tpu.core_type = #tpu.core_type<tc>, window_params = [{transform_indices = @transform_0, window_bounds = array<i64: 8, 32>}, {transform_indices = @transform_1, window_bounds = array<i64: 8, 8>}, {pipeline_mode = #tpu.pipeline_mode<synchronous>, transform_indices = @transform_2, window_bounds = array<i64: 32, 512>}, {pipeline_mode = #tpu.pipeline_mode<synchronous>, transform_indices = @transform_3, window_bounds = array<i64: 1, 512>}, {pipeline_mode = #tpu.pipeline_mode<synchronous>, transform_indices = @transform_4, window_bounds = array<i64: 512, 256>}, {pipeline_mode = #tpu.pipeline_mode<synchronous>, transform_indices = @transform_5, window_bounds = array<i64: 8, 256>}, {pipeline_mode = #tpu.pipeline_mode<synchronous>, transform_indices = @transform_6, window_bounds = array<i64: 1, 256>}, {pipeline_mode = #tpu.pipeline_mode<synchronous>, transform_indices = @transform_7, window_bounds = array<i64: 1, 256>}, {transform_indices = @transform_8, window_bounds = array<i64: 1>}, {transform_indices = @transform_9, window_bounds = array<i64: 8, 1>}]} {
    %c0 = arith.constant 0 : index
    %c0_0 = arith.constant 0 : index
    %0 = vector.load %arg1[%c0, %c0_0] : memref<8x32xf32, #tpu.memory_space<vmem>>, vector<8x32xf32>
    %1 = arith.truncf %0 : vector<8x32xf32> to vector<8x32xbf16>
    %c0_1 = arith.constant 0 : index
    %c0_2 = arith.constant 0 : index
    %2 = vector.load %arg3[%c0_1, %c0_2] : memref<32x512xbf16, #tpu.memory_space<vmem>>, vector<32x512xbf16>
    %cst = arith.constant dense<0.000000e+00> : vector<8x512xf32>
    %3 = tpu.matmul %1, %2, %cst {dimension_numbers = #tpu.dot_dimension_numbers<[1], [0], [0], [1], [0, 0, 1, 1], [], []>} : vector<8x32xbf16>, vector<32x512xbf16>, vector<8x512xf32> -> vector<8x512xf32>
    %c0_3 = arith.constant 0 : index
    %c0_4 = arith.constant 0 : index
    %4 = vector.load %arg4[%c0_3, %c0_4] : memref<1x512xf32, #tpu.memory_space<vmem>>, vector<1x512xf32>
    %5 = vector.broadcast %4 : vector<1x512xf32> to vector<8x512xf32>
    %6 = arith.addf %3, %5 : vector<8x512xf32>
    %cst_5 = arith.constant 0.000000e+00 : f32
    %7 = vector.broadcast %cst_5 : f32 to vector<8x512xf32>
    %8 = arith.maximumf %6, %7 : vector<8x512xf32>
    %9 = arith.truncf %8 : vector<8x512xf32> to vector<8x512xbf16>
    %c0_6 = arith.constant 0 : index
    %c0_7 = arith.constant 0 : index
    %10 = vector.load %arg5[%c0_6, %c0_7] : memref<512x256xbf16, #tpu.memory_space<vmem>>, vector<512x256xbf16>
    %cst_8 = arith.constant dense<0.000000e+00> : vector<8x256xf32>
    %11 = tpu.matmul %9, %10, %cst_8 {dimension_numbers = #tpu.dot_dimension_numbers<[1], [0], [0], [1], [0, 0, 1, 1], [], []>} : vector<8x512xbf16>, vector<512x256xbf16>, vector<8x256xf32> -> vector<8x256xf32>
    %c0_9 = arith.constant 0 : index
    %c0_10 = arith.constant 0 : index
    %12 = vector.load %arg2[%c0_9, %c0_10] : memref<8x8xf32, #tpu.memory_space<vmem>>, vector<8x8xf32>
    %13 = arith.truncf %12 : vector<8x8xf32> to vector<8x8xbf16>
    %c0_11 = arith.constant 0 : index
    %c0_12 = arith.constant 0 : index
    %14 = vector.load %arg6[%c0_11, %c0_12] : memref<8x256xbf16, #tpu.memory_space<vmem>>, vector<8x256xbf16>
    %cst_13 = arith.constant dense<0.000000e+00> : vector<8x256xf32>
    %15 = tpu.matmul %13, %14, %cst_13 {dimension_numbers = #tpu.dot_dimension_numbers<[1], [0], [0], [1], [0, 0, 1, 1], [], []>} : vector<8x8xbf16>, vector<8x256xbf16>, vector<8x256xf32> -> vector<8x256xf32>
    %16 = arith.addf %11, %15 : vector<8x256xf32>
    %c0_14 = arith.constant 0 : index
    %c0_15 = arith.constant 0 : index
    %17 = vector.load %arg7[%c0_14, %c0_15] : memref<1x256xf32, #tpu.memory_space<vmem>>, vector<1x256xf32>
    %18 = vector.broadcast %17 : vector<1x256xf32> to vector<8x256xf32>
    %19 = arith.addf %16, %18 : vector<8x256xf32>
    %cst_16 = arith.constant 0.000000e+00 : f32
    %20 = vector.broadcast %cst_16 : f32 to vector<8x256xf32>
    %21 = arith.maximumf %19, %20 : vector<8x256xf32>
    %c0_17 = arith.constant 0 : index
    %c0_18 = arith.constant 0 : index
    %22 = vector.load %arg8[%c0_17, %c0_18] : memref<1x256xf32, #tpu.memory_space<vmem>>, vector<1x256xf32>
    %23 = vector.broadcast %22 : vector<1x256xf32> to vector<8x256xf32>
    %24 = arith.mulf %21, %23 : vector<8x256xf32>
    %cst_19 = arith.constant dense<0.000000e+00> : vector<8xf32>
    %25 = vector.multi_reduction <add>, %24, %cst_19 [1] : vector<8x256xf32> to vector<8xf32>
    %26 = vector.shape_cast %25 : vector<8xf32> to vector<8x1xf32>
    %c0_20 = arith.constant 0 : index
    %27 = memref.load %arg9[%c0_20] : memref<1xf32, #tpu.memory_space<smem>>
    %28 = vector.broadcast %27 : f32 to vector<8x1xf32>
    %29 = arith.addf %26, %28 : vector<8x1xf32>
    %c0_21 = arith.constant 0 : index
    %c0_22 = arith.constant 0 : index
    %30 = vector.load %arg10[%c0_21, %c0_22] : memref<8x1xf32, #tpu.memory_space<vmem>>, vector<8x1xf32>
    tpu.vector_store %arg10[%c0_21, %c0_22], %29 {strides = array<i32>} : memref<8x1xf32, #tpu.memory_space<vmem>>, vector<8x1xf32>,
    return
  }
  func.func @transform_0(%arg0: i32) -> (i32, i32) {
    %c0_i32 = arith.constant 0 : i32
    %c0_i32_0 = arith.constant 0 : i32
    return %arg0, %c0_i32 : i32, i32
  }
  func.func @transform_1(%arg0: i32) -> (i32, i32) {
    %c0_i32 = arith.constant 0 : i32
    %c0_i32_0 = arith.constant 0 : i32
    return %arg0, %c0_i32 : i32, i32
  }
  func.func @transform_2(%arg0: i32) -> (i32, i32) {
    %c0_i32 = arith.constant 0 : i32
    %c0_i32_0 = arith.constant 0 : i32
    %c0_i32_1 = arith.constant 0 : i32
    return %c0_i32, %c0_i32_0 : i32, i32
  }
  func.func @transform_3(%arg0: i32) -> (i32, i32) {
    %c0_i32 = arith.constant 0 : i32
    %c0_i32_0 = arith.constant 0 : i32
    %c0_i32_1 = arith.constant 0 : i32
    return %c0_i32, %c0_i32_0 : i32, i32
  }
  func.func @transform_4(%arg0: i32) -> (i32, i32) {
    %c0_i32 = arith.constant 0 : i32
    %c0_i32_0 = arith.constant 0 : i32
    %c0_i32_1 = arith.constant 0 : i32
    return %c0_i32, %c0_i32_0 : i32, i32
  }
  func.func @transform_5(%arg0: i32) -> (i32, i32) {
    %c0_i32 = arith.constant 0 : i32
    %c0_i32_0 = arith.constant 0 : i32
    %c0_i32_1 = arith.constant 0 : i32
    return %c0_i32, %c0_i32_0 : i32, i32
  }
  func.func @transform_6(%arg0: i32) -> (i32, i32) {
    %c0_i32 = arith.constant 0 : i32
    %c0_i32_0 = arith.constant 0 : i32
    %c0_i32_1 = arith.constant 0 : i32
    return %c0_i32, %c0_i32_0 : i32, i32
  }
  func.func @transform_7(%arg0: i32) -> (i32, i32) {
    %c0_i32 = arith.constant 0 : i32
    %c0_i32_0 = arith.constant 0 : i32
    %c0_i32_1 = arith.constant 0 : i32
    return %c0_i32, %c0_i32_0 : i32, i32
  }
  func.func @transform_8(%arg0: i32) -> i32 {
    %c0_i32 = arith.constant 0 : i32
    %c0_i32_0 = arith.constant 0 : i32
    return %c0_i32 : i32
  }
  func.func @transform_9(%arg0: i32) -> (i32, i32) {
    %c0_i32 = arith.constant 0 : i32
    %c0_i32_0 = arith.constant 0 : i32
    return %arg0, %c0_i32 : i32, i32
  }
}

</mosaic_0001>

<llo_original>
// kernel: tpu_custom_call.1
$region0: #{tpu_custom_call.1}
  #allocation0 [shape = 'u32[]', space=smem, size = 0x4, offset = 0x4, fixed_abs, tag = 'smem constant byte address 0x4 - core index']
  #allocation1 [shape = 'u32[72,128]{1,0:T(1,128)}', space=vmem, size = 0x9000, scoped, tag = 'internal scratch']
  #allocation2 [shape = 'f32[1]{0:T(128)S(6)}', space=smem, size = 0x200, scoped, tag = 'scoped memory for tpu_custom_call.1']
  %s0 = inlined_call_operand.hbm [shape: f32[8,32], index: 0, kind: input, shape index: {}]
  %s1 = inlined_call_operand.hbm [shape: f32[8,8], index: 1, kind: input, shape index: {}]
  %s2 = inlined_call_operand.hbm [shape: bf16[32,512], index: 2, kind: input, shape index: {}]
  %s3 = inlined_call_operand.vmem [shape: f32[1,512], index: 3, kind: input, shape index: {}]
  %s4 = inlined_call_operand.hbm [shape: bf16[512,256], index: 4, kind: input, shape index: {}]
  %s5 = inlined_call_operand.hbm [shape: bf16[8,256], index: 5, kind: input, shape index: {}]
  %s6 = inlined_call_operand.vmem [shape: f32[1,256], index: 6, kind: input, shape index: {}]
  %s7 = inlined_call_operand.vmem [shape: f32[1,256], index: 7, kind: input, shape index: {}]
  %s8 = inlined_call_operand.<no memory space> [shape: f32[1], index: 8, kind: input, shape index: {}]
  %s9 = inlined_call_operand.vmem [shape: f32[8,1], index: 9, kind: output, shape index: {}]
  %s10 = sld [smem:[#allocation0]]
  $region66: #{tpu_custom_call.1} parent=0
    _
  %s12 = ssub.s32 1, %s10
  %s13 = scalar_select 0, %s12, %s10
  %14 = sst [smem:[#allocation2]] %s8
  $region1: #{tpu_custom_call.1} parent=0
    #allocation3 [shape = 'u8[4096]{0}', space=vmem, size = 0x1000, scoped, tag = 'input window, operand 0, single buffered']
    #allocation4 [shape = 's32[1]{0}', space=sflag, size = 0x4, scoped, tag = 'scoped memory for tpu_custom_call.1']
    #allocation5 [shape = 'u8[4096]{0}', space=vmem, size = 0x1000, scoped, tag = 'input window, operand 1, single buffered']
    #allocation6 [shape = 's32[1]{0}', space=sflag, size = 0x4, scoped, tag = 'scoped memory for tpu_custom_call.1']
    #allocation7 [shape = 'u8[32768]{0}', space=vmem, size = 0x8000, scoped, tag = 'input window, operand 2, single buffered']
    #allocation8 [shape = 'u8[262144]{0}', space=vmem, size = 0x40000, scoped, tag = 'input window, operand 4, single buffered']
    #allocation9 [shape = 's32[1]{0}', space=sflag, size = 0x4, scoped, tag = 'scoped memory for tpu_custom_call.1']
    #allocation10 [shape = 'u8[4096]{0}', space=vmem, size = 0x1000, scoped, tag = 'input window, operand 5, single buffered']
    %15 = vsyncpa [#allocation4], 0
    %16 = vsyncpa [#allocation6], 0
    %17 = vsyncpa [#allocation9], 0
    // Predicated region
    $region2: #{tpu_custom_call.1} parent=1 // pred_check
      _
    $region3: #{tpu_custom_call.1} parent=1 // pred_check_branch
      %19 = sbr.rel (0) target = $region5
    $region4: #{tpu_custom_call.1} parent=1 // pred_region
      %21 = vsyncadd [#allocation4], 0
      %s23 = sshll.u32 %s0, 4
      %s24 = int_to_ptr.hbm [resolvable:$true] %s23
      %s25 = sshll.u32 [#allocation3], 4
      %s26 = int_to_ptr.vmem [resolvable:$true] %s25
      %28 = dma.hbm_to_vmem [thread:$0]  %s24, 128, %s26, [#allocation4]
    $region5: #{tpu_custom_call.1} parent=1 // pred_fallthru
      _
    // Predicated region
    $region6: #{tpu_custom_call.1} parent=1 // pred_check
      _
    $region7: #{tpu_custom_call.1} parent=1 // pred_check_branch
      %30 = sbr.rel (0) target = $region9
    $region8: #{tpu_custom_call.1} parent=1 // pred_region
      %32 = vsyncadd [#allocation6], 0
      %s34 = sshll.u32 %s1, 4
      %s35 = int_to_ptr.hbm [resolvable:$true] %s34
      %s36 = sshll.u32 [#allocation5], 4
      %s37 = int_to_ptr.vmem [resolvable:$true] %s36
      %39 = dma.hbm_to_vmem [thread:$0]  %s35, 128, %s37, [#allocation6]
    $region9: #{tpu_custom_call.1} parent=1 // pred_fallthru
      _
    // Predicated region
    $region10: #{tpu_custom_call.1} parent=1 // pred_check
      _
    $region11: #{tpu_custom_call.1} parent=1 // pred_check_branch
      %41 = sbr.rel (0) target = $region13
    $region12: #{tpu_custom_call.1} parent=1 // pred_region
      %43 = vsyncadd [#allocation6], 0
      %s44 = sshll.u32 %s2, 4
      %s45 = int_to_ptr.hbm [resolvable:$true] %s44
      %s46 = sshll.u32 [#allocation7], 4
      %s47 = int_to_ptr.vmem [resolvable:$true] %s46
      %52 = dma.hbm_to_vmem [thread:$0]  %s45, 1024, %s47, [#allocation6], 256, 256, 16
    $region13: #{tpu_custom_call.1} parent=1 // pred_fallthru
      _
    // Predicated region
    $region14: #{tpu_custom_call.1} parent=1 // pred_check
      _
    $region15: #{tpu_custom_call.1} parent=1 // pred_check_branch
      %54 = sbr.rel (0) target = $region17
    $region16: #{tpu_custom_call.1} parent=1 // pred_region
      _
    $region17: #{tpu_custom_call.1} parent=1 // pred_fallthru
      _
    // Predicated region
    $region18: #{tpu_custom_call.1} parent=1 // pred_check
      _
    $region19: #{tpu_custom_call.1} parent=1 // pred_check_branch
      %56 = sbr.rel (0) target = $region21
    $region20: #{tpu_custom_call.1} parent=1 // pred_region
      %58 = vsyncadd [#allocation9], 0
      %s59 = sshll.u32 %s4, 4
      %s60 = int_to_ptr.hbm [resolvable:$true] %s59
      %s61 = sshll.u32 [#allocation8], 4
      %s62 = int_to_ptr.vmem [resolvable:$true] %s61
      %67 = dma.hbm_to_vmem [thread:$0]  %s60, 8192, %s62, [#allocation9], 128, 128, 8
    $region21: #{tpu_custom_call.1} parent=1 // pred_fallthru
      _
    // Predicated region
    $region22: #{tpu_custom_call.1} parent=1 // pred_check
      _
    $region23: #{tpu_custom_call.1} parent=1 // pred_check_branch
      %69 = sbr.rel (0) target = $region25
    $region24: #{tpu_custom_call.1} parent=1 // pred_region
      %71 = vsyncadd [#allocation9], 0
      %s73 = sshll.u32 %s5, 4
      %s74 = int_to_ptr.hbm [resolvable:$true] %s73
      %s75 = sshll.u32 [#allocation10], 4
      %s76 = int_to_ptr.vmem [resolvable:$true] %s75
      %78 = dma.hbm_to_vmem [thread:$0]  %s74, 128, %s76, [#allocation9]
    $region25: #{tpu_custom_call.1} parent=1 // pred_fallthru
      _
    // Predicated region
    $region26: #{tpu_custom_call.1} parent=1 // pred_check
      _
    $region27: #{tpu_custom_call.1} parent=1 // pred_check_branch
      %80 = sbr.rel (0) target = $region29
    $region28: #{tpu_custom_call.1} parent=1 // pred_region
      _
    $region29: #{tpu_custom_call.1} parent=1 // pred_fallthru
      _
    // Predicated region
    $region30: #{tpu_custom_call.1} parent=1 // pred_check
      _
    $region31: #{tpu_custom_call.1} parent=1 // pred_check_branch
      %82 = sbr.rel (0) target = $region33
    $region32: #{tpu_custom_call.1} parent=1 // pred_region
      _
    $region33: #{tpu_custom_call.1} parent=1 // pred_fallthru
      _
    // Predicated region
    $region34: #{tpu_custom_call.1} parent=1 // pred_check
      _
    $region35: #{tpu_custom_call.1} parent=1 // pred_check_branch
      %84 = sbr.rel (0) target = $region37
    $region36: #{tpu_custom_call.1} parent=1 // pred_region
      _
    $region37: #{tpu_custom_call.1} parent=1 // pred_fallthru
      _
    // Predicated region
    $region38: #{tpu_custom_call.1} parent=1 // pred_check
      _
    $region39: #{tpu_custom_call.1} parent=1 // pred_check_branch
      %86 = sbr.rel (0) target = $region41
    $region40: #{tpu_custom_call.1} parent=1 // pred_region
      %88 = dma.done [#allocation4], 128
    $region41: #{tpu_custom_call.1} parent=1 // pred_fallthru
      _
    // Predicated region
    $region42: #{tpu_custom_call.1} parent=1 // pred_check
      _
    $region43: #{tpu_custom_call.1} parent=1 // pred_check_branch
      %90 = sbr.rel (0) target = $region45
    $region44: #{tpu_custom_call.1} parent=1 // pred_region
      %92 = dma.done [#allocation6], 128
    $region45: #{tpu_custom_call.1} parent=1 // pred_fallthru
      _
    // Predicated region
    $region46: #{tpu_custom_call.1} parent=1 // pred_check
      _
    $region47: #{tpu_custom_call.1} parent=1 // pred_check_branch
      %94 = sbr.rel (0) target = $region49
    $region48: #{tpu_custom_call.1} parent=1 // pred_region
      %96 = dma.done [#allocation6], 1024
    $region49: #{tpu_custom_call.1} parent=1 // pred_fallthru
      _
    // Predicated region
    $region50: #{tpu_custom_call.1} parent=1 // pred_check
      _
    $region51: #{tpu_custom_call.1} parent=1 // pred_check_branch
      %98 = sbr.rel (0) target = $region53
    $region52: #{tpu_custom_call.1} parent=1 // pred_region
      %100 = dma.done [#allocation9], 8192
    $region53: #{tpu_custom_call.1} parent=1 // pred_fallthru
      _
    // Predicated region
    $region54: #{tpu_custom_call.1} parent=1 // pred_check
      _
    $region55: #{tpu_custom_call.1} parent=1 // pred_check_branch
      %102 = sbr.rel (0) target = $region57
    $region56: #{tpu_custom_call.1} parent=1 // pred_region
      %104 = dma.done [#allocation9], 128
    $region57: #{tpu_custom_call.1} parent=1 // pred_fallthru
      _
    %v106 = vld [vmem:[#allocation3] sm:$0xff]
    %v107 = vpack.c.bf16 %v106, %v106
    %v108 = vld [vmem:[#allocation7] sm:$0xff]
    %v109 = vld [vmem:[#allocation7 + $0x8] sm:$0xff]
    %v110 = vld [vmem:[#allocation7 + $0x10] sm:$0xff]
    %v111 = vld [vmem:[#allocation7 + $0x18] sm:$0xff]
    %v112 = vld [vmem:[#allocation7 + $0x20] sm:$0xff]
    %v113 = vld [vmem:[#allocation7 + $0x28] sm:$0xff]
    %v114 = vld [vmem:[#allocation7 + $0x30] sm:$0xff]
    %v115 = vld [vmem:[#allocation7 + $0x38] sm:$0xff]
    %v116 = vld [vmem:[%s3] sm:$0xf]
    %v118 = vperm.slane %v116, 0
    %v119 = vperm.slane %v116, 1
    %v120 = vperm.slane %v116, 2
    %v121 = vperm.slane %v116, 3
    %v134 = vunpack.c.l.b16 %v108
    %v135 = vunpack.c.h.b16 %v108
    %v136 = vunpack.c.l.b16 %v109
    %v137 = vunpack.c.h.b16 %v109
    %v138 = vunpack.c.l.b16 %v110
    %v139 = vunpack.c.h.b16 %v110
    %v140 = vunpack.c.l.b16 %v111
    %v141 = vunpack.c.h.b16 %v111
    %v142 = vunpack.c.l.b16 %v112
    %v143 = vunpack.c.h.b16 %v112
    %v144 = vunpack.c.l.b16 %v113
    %v145 = vunpack.c.h.b16 %v113
    %v146 = vunpack.c.l.b16 %v114
    %v147 = vunpack.c.h.b16 %v114
    %v148 = vunpack.c.l.b16 %v115
    %v149 = vunpack.c.h.b16 %v115
    %v150 = vpack.c.b16 %v138, %v134
    %v151 = vpack.c.b16 %v139, %v135
    %v152 = vpack.c.b16 %v140, %v136
    %v153 = vpack.c.b16 %v141, %v137
    %v154 = vpack.c.b16 %v146, %v142
    %v155 = vpack.c.b16 %v147, %v143
    %v156 = vpack.c.b16 %v148, %v144
    %v157 = vpack.c.b16 %v149, %v145
    %vm166 = vcmask 261120
    %v168 = vsel %vm166, %v107, 0
    %170 = vmatpush.bf16.msra.mxu0 0
    %171 = vmatpush.bf16.msra.mxu0 0
    %172 = vmatpush.bf16.msra.mxu0 0
    %173 = vmatpush.bf16.msra.mxu0 0
    %174 = vmatpush.bf16.msra.mxu0 0
    %175 = vmatpush.bf16.msra.mxu0 0
    %176 = vmatpush.bf16.msra.mxu0 %v154
    %177 = vmatpush.bf16.msra.mxu0 %v150
    %178 = vmatmul.bf16.gmra.mxu0 %v168
    %v179 = vpop.f32.mrf.mxu0
    %v180 = vadd.f32 %v118, %v179
    %v181 = vpop.f32.mrf.mxu0
    %182 = vdwg.mxu0
    %183 = vmatpush.bf16.msra.mxu0 0
    %184 = vmatpush.bf16.msra.mxu0 0
    %185 = vmatpush.bf16.msra.mxu0 0
    %186 = vmatpush.bf16.msra.mxu0 0
    %187 = vmatpush.bf16.msra.mxu0 0
    %188 = vmatpush.bf16.msra.mxu0 0
    %189 = vmatpush.bf16.msra.mxu0 %v155
    %190 = vmatpush.bf16.msra.mxu0 %v151
    %191 = vmatmul.bf16.gmra.mxu0 %v168
    %v192 = vpop.f32.mrf.mxu0
    %v193 = vadd.f32 %v119, %v192
    %v194 = vpop.f32.mrf.mxu0
    %195 = vdwg.mxu0
    %196 = vmatpush.bf16.msra.mxu0 0
    %197 = vmatpush.bf16.msra.mxu0 0
    %198 = vmatpush.bf16.msra.mxu0 0
    %199 = vmatpush.bf16.msra.mxu0 0
    %200 = vmatpush.bf16.msra.mxu0 0
    %201 = vmatpush.bf16.msra.mxu0 0
    %202 = vmatpush.bf16.msra.mxu0 %v156
    %203 = vmatpush.bf16.msra.mxu0 %v152
    %204 = vmatmul.bf16.gmra.mxu0 %v168
    %v205 = vpop.f32.mrf.mxu0
    %v206 = vadd.f32 %v120, %v205
    %v207 = vpop.f32.mrf.mxu0
    %208 = vdwg.mxu0
    %209 = vmatpush.bf16.msra.mxu0 0
    %210 = vmatpush.bf16.msra.mxu0 0
    %211 = vmatpush.bf16.msra.mxu0 0
    %212 = vmatpush.bf16.msra.mxu0 0
    %213 = vmatpush.bf16.msra.mxu0 0
    %214 = vmatpush.bf16.msra.mxu0 0
    %215 = vmatpush.bf16.msra.mxu0 %v157
    %216 = vmatpush.bf16.msra.mxu0 %v153
    %217 = vmatmul.bf16.gmra.mxu0 %v168
    %v218 = vpop.f32.mrf.mxu0
    %v219 = vadd.f32 %v121, %v218
    %v220 = vpop.f32.mrf.mxu0
    %221 = vdwg.mxu0
    %v222 = vmax.f32 %v180, 0.0
    %v223 = vmax.f32 %v193, 0.0
    %v224 = vmax.f32 %v206, 0.0
    %v225 = vmax.f32 %v219, 0.0
    %v226 = vpack.c.bf16 %v222, %v222
    %v227 = vpack.c.bf16 %v223, %v223
    %v228 = vpack.c.bf16 %v224, %v224
    %v229 = vpack.c.bf16 %v225, %v225
    %v230 = vld [vmem:[#allocation8] sm:$0xff]
    %v231 = vld [vmem:[#allocation8 + $0x8] sm:$0xff]
    %v232 = vld [vmem:[#allocation8 + $0x10] sm:$0xff]
    %v233 = vld [vmem:[#allocation8 + $0x18] sm:$0xff]
    %v234 = vld [vmem:[#allocation8 + $0x20] sm:$0xff]
    %v235 = vld [vmem:[#allocation8 + $0x28] sm:$0xff]
    %v236 = vld [vmem:[#allocation8 + $0x30] sm:$0xff]
    %v237 = vld [vmem:[#allocation8 + $0x38] sm:$0xff]
    %v238 = vld [vmem:[#allocation8 + $0x40] sm:$0xff]
    %v239 = vld [vmem:[#allocation8 + $0x48] sm:$0xff]
    %v240 = vld [vmem:[#allocation8 + $0x50] sm:$0xff]
    %v241 = vld [vmem:[#allocation8 + $0x58] sm:$0xff]
    %v242 = vld [vmem:[#allocation8 + $0x60] sm:$0xff]
    %v243 = vld [vmem:[#allocation8 + $0x68] sm:$0xff]
    %v244 = vld [vmem:[#allocation8 + $0x70] sm:$0xff]
    %v245 = vld [vmem:[#allocation8 + $0x78] sm:$0xff]
    %v246 = vld [vmem:[#allocation8 + $0x80] sm:$0xff]
    %v247 = vld [vmem:[#allocation8 + $0x88] sm:$0xff]
    %v248 = vld [vmem:[#allocation8 + $0x90] sm:$0xff]
    %v249 = vld [vmem:[#allocation8 + $0x98] sm:$0xff]
    %v250 = vld [vmem:[#allocation8 + $0xa0] sm:$0xff]
    %v251 = vld [vmem:[#allocation8 + $0xa8] sm:$0xff]
    %v252 = vld [vmem:[#allocation8 + $0xb0] sm:$0xff]
    %v253 = vld [vmem:[#allocation8 + $0xb8] sm:$0xff]
    %v254 = vld [vmem:[#allocation8 + $0xc0] sm:$0xff]
    %v255 = vld [vmem:[#allocation8 + $0xc8] sm:$0xff]
    %v256 = vld [vmem:[#allocation8 + $0xd0] sm:$0xff]
    %v257 = vld [vmem:[#allocation8 + $0xd8] sm:$0xff]
    %v258 = vld [vmem:[#allocation8 + $0xe0] sm:$0xff]
    %v259 = vld [vmem:[#allocation8 + $0xe8] sm:$0xff]
    %v260 = vld [vmem:[#allocation8 + $0xf0] sm:$0xff]
    %v261 = vld [vmem:[#allocation8 + $0xf8] sm:$0xff]
    %v262 = vld [vmem:[#allocation8 + $0x100] sm:$0xff]
    %v263 = vld [vmem:[#allocation8 + $0x108] sm:$0xff]
    %v264 = vld [vmem:[#allocation8 + $0x110] sm:$0xff]
    %v265 = vld [vmem:[#allocation8 + $0x118] sm:$0xff]
    %v266 = vld [vmem:[#allocation8 + $0x120] sm:$0xff]
    %v267 = vld [vmem:[#allocation8 + $0x128] sm:$0xff]
    %v268 = vld [vmem:[#allocation8 + $0x130] sm:$0xff]
    %v269 = vld [vmem:[#allocation8 + $0x138] sm:$0xff]
    %v270 = vld [vmem:[#allocation8 + $0x140] sm:$0xff]
    %v271 = vld [vmem:[#allocation8 + $0x148] sm:$0xff]
    %v272 = vld [vmem:[#allocation8 + $0x150] sm:$0xff]
    %v273 = vld [vmem:[#allocation8 + $0x158] sm:$0xff]
    %v274 = vld [vmem:[#allocation8 + $0x160] sm:$0xff]
    %v275 = vld [vmem:[#allocation8 + $0x168] sm:$0xff]
    %v276 = vld [vmem:[#allocation8 + $0x170] sm:$0xff]
    %v277 = vld [vmem:[#allocation8 + $0x178] sm:$0xff]
    %v278 = vld [vmem:[#allocation8 + $0x180] sm:$0xff]
    %v279 = vld [vmem:[#allocation8 + $0x188] sm:$0xff]
    %v280 = vld [vmem:[#allocation8 + $0x190] sm:$0xff]
    %v281 = vld [vmem:[#allocation8 + $0x198] sm:$0xff]
    %v282 = vld [vmem:[#allocation8 + $0x1a0] sm:$0xff]
    %v283 = vld [vmem:[#allocation8 + $0x1a8] sm:$0xff]
    %v284 = vld [vmem:[#allocation8 + $0x1b0] sm:$0xff]
    %v285 = vld [vmem:[#allocation8 + $0x1b8] sm:$0xff]
    %v286 = vld [vmem:[#allocation8 + $0x1c0] sm:$0xff]
    %v287 = vld [vmem:[#allocation8 + $0x1c8] sm:$0xff]
    %v288 = vld [vmem:[#allocation8 + $0x1d0] sm:$0xff]
    %v289 = vld [vmem:[#allocation8 + $0x1d8] sm:$0xff]
    %v290 = vld [vmem:[#allocation8 + $0x1e0] sm:$0xff]
    %v291 = vld [vmem:[#allocation8 + $0x1e8] sm:$0xff]
    %v292 = vld [vmem:[#allocation8 + $0x1f0] sm:$0xff]
    %v293 = vld [vmem:[#allocation8 + $0x1f8] sm:$0xff]
    %v294 = vld [vmem:[#allocation5] sm:$0xff]
    %v295 = vpack.c.bf16 %v294, %v294
    %v296 = vld [vmem:[#allocation10] sm:$0xff]
    %v298 = vunpack.c.l.b16 %v296
    %v299 = vunpack.c.h.b16 %v296
    %v300 = vpack.c.b16 %v298, %v298
    %v301 = vpack.c.b16 %v299, %v299
    %vm302 = vcmask 64512
    %v304 = vsel %vm302, %v295, 0
    %vm306 = vcmask 1043456
    %v308 = vsel %vm306, %v300, 0
    %v311 = vsel %vm306, %v301, 0
    %313 = vmatpush.bf16.msra.mxu0 0
    %314 = vmatpush.bf16.msra.mxu0 0
    %315 = vmatpush.bf16.msra.mxu0 0
    %316 = vmatpush.bf16.msra.mxu0 0
    %317 = vmatpush.bf16.msra.mxu0 0
    %318 = vmatpush.bf16.msra.mxu0 0
    %319 = vmatpush.bf16.msra.mxu0 0
    %320 = vmatpush.bf16.msra.mxu0 %v308
    %321 = vmatmul.bf16.gmra.mxu0 %v304
    %v322 = vpop.f32.mrf.mxu0
    %v323 = vadd.f32 0.0, %v322
    %v324 = vpop.f32.mrf.mxu0
    %325 = vdwg.mxu0
    %326 = vmatpush.bf16.msra.mxu0 0
    %327 = vmatpush.bf16.msra.mxu0 0
    %328 = vmatpush.bf16.msra.mxu0 0
    %329 = vmatpush.bf16.msra.mxu0 0
    %330 = vmatpush.bf16.msra.mxu0 0
    %331 = vmatpush.bf16.msra.mxu0 0
    %332 = vmatpush.bf16.msra.mxu0 0
    %333 = vmatpush.bf16.msra.mxu0 %v311
    %334 = vmatmul.bf16.gmra.mxu0 %v304
    %v335 = vpop.f32.mrf.mxu0
    %v336 = vadd.f32 0.0, %v335
    %v337 = vpop.f32.mrf.mxu0
    %338 = vdwg.mxu0
    %v403 = vunpack.c.l.b16 %v230
    %v404 = vunpack.c.h.b16 %v230
    %v405 = vunpack.c.l.b16 %v231
    %v406 = vunpack.c.h.b16 %v231
    %v407 = vunpack.c.l.b16 %v232
    %v408 = vunpack.c.h.b16 %v232
    %v409 = vunpack.c.l.b16 %v233
    %v410 = vunpack.c.h.b16 %v233
    %v411 = vunpack.c.l.b16 %v234
    %v412 = vunpack.c.h.b16 %v234
    %v413 = vunpack.c.l.b16 %v235
    %v414 = vunpack.c.h.b16 %v235
    %v415 = vunpack.c.l.b16 %v236
    %v416 = vunpack.c.h.b16 %v236
    %v417 = vunpack.c.l.b16 %v237
    %v418 = vunpack.c.h.b16 %v237
    %v419 = vunpack.c.l.b16 %v238
    %v420 = vunpack.c.h.b16 %v238
    %v421 = vunpack.c.l.b16 %v239
    %v422 = vunpack.c.h.b16 %v239
    %v423 = vunpack.c.l.b16 %v240
    %v424 = vunpack.c.h.b16 %v240
    %v425 = vunpack.c.l.b16 %v241
    %v426 = vunpack.c.h.b16 %v241
    %v427 = vunpack.c.l.b16 %v242
    %v428 = vunpack.c.h.b16 %v242
    %v429 = vunpack.c.l.b16 %v243
    %v430 = vunpack.c.h.b16 %v243
    %v431 = vunpack.c.l.b16 %v244
    %v432 = vunpack.c.h.b16 %v244
    %v433 = vunpack.c.l.b16 %v245
    %v434 = vunpack.c.h.b16 %v245
    %v435 = vunpack.c.l.b16 %v246
    %v436 = vunpack.c.h.b16 %v246
    %v437 = vunpack.c.l.b16 %v247
    %v438 = vunpack.c.h.b16 %v247
    %v439 = vunpack.c.l.b16 %v248
    %v440 = vunpack.c.h.b16 %v248
    %v441 = vunpack.c.l.b16 %v249
    %v442 = vunpack.c.h.b16 %v249
    %v443 = vunpack.c.l.b16 %v250
    %v444 = vunpack.c.h.b16 %v250
    %v445 = vunpack.c.l.b16 %v251
    %v446 = vunpack.c.h.b16 %v251
    %v447 = vunpack.c.l.b16 %v252
    %v448 = vunpack.c.h.b16 %v252
    %v449 = vunpack.c.l.b16 %v253
    %v450 = vunpack.c.h.b16 %v253
    %v451 = vunpack.c.l.b16 %v254
    %v452 = vunpack.c.h.b16 %v254
    %v453 = vunpack.c.l.b16 %v255
    %v454 = vunpack.c.h.b16 %v255
    %v455 = vunpack.c.l.b16 %v256
    %v456 = vunpack.c.h.b16 %v256
    %v457 = vunpack.c.l.b16 %v257
    %v458 = vunpack.c.h.b16 %v257
    %v459 = vunpack.c.l.b16 %v258
    %v460 = vunpack.c.h.b16 %v258
    %v461 = vunpack.c.l.b16 %v259
    %v462 = vunpack.c.h.b16 %v259
    %v463 = vunpack.c.l.b16 %v260
    %v464 = vunpack.c.h.b16 %v260
    %v465 = vunpack.c.l.b16 %v261
    %v466 = vunpack.c.h.b16 %v261
    %v467 = vunpack.c.l.b16 %v262
    %v468 = vunpack.c.h.b16 %v262
    %v469 = vunpack.c.l.b16 %v263
    %v470 = vunpack.c.h.b16 %v263
    %v471 = vunpack.c.l.b16 %v264
    %v472 = vunpack.c.h.b16 %v264
    %v473 = vunpack.c.l.b16 %v265
    %v474 = vunpack.c.h.b16 %v265
    %v475 = vunpack.c.l.b16 %v266
    %v476 = vunpack.c.h.b16 %v266
    %v477 = vunpack.c.l.b16 %v267
    %v478 = vunpack.c.h.b16 %v267
    %v479 = vunpack.c.l.b16 %v268
    %v480 = vunpack.c.h.b16 %v268
    %v481 = vunpack.c.l.b16 %v269
    %v482 = vunpack.c.h.b16 %v269
    %v483 = vunpack.c.l.b16 %v270
    %v484 = vunpack.c.h.b16 %v270
    %v485 = vunpack.c.l.b16 %v271
    %v486 = vunpack.c.h.b16 %v271
    %v487 = vunpack.c.l.b16 %v272
    %v488 = vunpack.c.h.b16 %v272
    %v489 = vunpack.c.l.b16 %v273
    %v490 = vunpack.c.h.b16 %v273
    %v491 = vunpack.c.l.b16 %v274
    %v492 = vunpack.c.h.b16 %v274
    %v493 = vunpack.c.l.b16 %v275
    %v494 = vunpack.c.h.b16 %v275
    %v495 = vunpack.c.l.b16 %v276
    %v496 = vunpack.c.h.b16 %v276
    %v497 = vunpack.c.l.b16 %v277
    %v498 = vunpack.c.h.b16 %v277
    %v499 = vunpack.c.l.b16 %v278
    %v500 = vunpack.c.h.b16 %v278
    %v501 = vunpack.c.l.b16 %v279
    %v502 = vunpack.c.h.b16 %v279
    %v503 = vunpack.c.l.b16 %v280
    %v504 = vunpack.c.h.b16 %v280
    %v505 = vunpack.c.l.b16 %v281
    %v506 = vunpack.c.h.b16 %v281
    %v507 = vunpack.c.l.b16 %v282
    %v508 = vunpack.c.h.b16 %v282
    %v509 = vunpack.c.l.b16 %v283
    %v510 = vunpack.c.h.b16 %v283
    %v511 = vunpack.c.l.b16 %v284
    %v512 = vunpack.c.h.b16 %v284
    %v513 = vunpack.c.l.b16 %v285
    %v514 = vunpack.c.h.b16 %v285
    %v515 = vunpack.c.l.b16 %v286
    %v516 = vunpack.c.h.b16 %v286
    %v517 = vunpack.c.l.b16 %v287
    %v518 = vunpack.c.h.b16 %v287
    %v519 = vunpack.c.l.b16 %v288
    %v520 = vunpack.c.h.b16 %v288
    %v521 = vunpack.c.l.b16 %v289
    %v522 = vunpack.c.h.b16 %v289
    %v523 = vunpack.c.l.b16 %v290
    %v524 = vunpack.c.h.b16 %v290
    %v525 = vunpack.c.l.b16 %v291
    %v526 = vunpack.c.h.b16 %v291
    %v527 = vunpack.c.l.b16 %v292
    %v528 = vunpack.c.h.b16 %v292
    %v529 = vunpack.c.l.b16 %v293
    %v530 = vunpack.c.h.b16 %v293
    %v531 = vpack.c.b16 %v405, %v403
    %v532 = vpack.c.b16 %v406, %v404
    %v533 = vpack.c.b16 %v409, %v407
    %v534 = vpack.c.b16 %v410, %v408
    %v535 = vpack.c.b16 %v413, %v411
    %v536 = vpack.c.b16 %v414, %v412
    %v537 = vpack.c.b16 %v417, %v415
    %v538 = vpack.c.b16 %v418, %v416
    %v539 = vpack.c.b16 %v421, %v419
    %v540 = vpack.c.b16 %v422, %v420
    %v541 = vpack.c.b16 %v425, %v423
    %v542 = vpack.c.b16 %v426, %v424
    %v543 = vpack.c.b16 %v429, %v427
    %v544 = vpack.c.b16 %v430, %v428
    %v545 = vpack.c.b16 %v433, %v431
    %v546 = vpack.c.b16 %v434, %v432
    %v547 = vpack.c.b16 %v437, %v435
    %v548 = vpack.c.b16 %v438, %v436
    %v549 = vpack.c.b16 %v441, %v439
    %v550 = vpack.c.b16 %v442, %v440
    %v551 = vpack.c.b16 %v445, %v443
    %v552 = vpack.c.b16 %v446, %v444
    %v553 = vpack.c.b16 %v449, %v447
    %v554 = vpack.c.b16 %v450, %v448
    %v555 = vpack.c.b16 %v453, %v451
    %v556 = vpack.c.b16 %v454, %v452
    %v557 = vpack.c.b16 %v457, %v455
    %v558 = vpack.c.b16 %v458, %v456
    %v559 = vpack.c.b16 %v461, %v459
    %v560 = vpack.c.b16 %v462, %v460
    %v561 = vpack.c.b16 %v465, %v463
    %v562 = vpack.c.b16 %v466, %v464
    %v563 = vpack.c.b16 %v469, %v467
    %v564 = vpack.c.b16 %v470, %v468
    %v565 = vpack.c.b16 %v473, %v471
    %v566 = vpack.c.b16 %v474, %v472
    %v567 = vpack.c.b16 %v477, %v475
    %v568 = vpack.c.b16 %v478, %v476
    %v569 = vpack.c.b16 %v481, %v479
    %v570 = vpack.c.b16 %v482, %v480
    %v571 = vpack.c.b16 %v485, %v483
    %v572 = vpack.c.b16 %v486, %v484
    %v573 = vpack.c.b16 %v489, %v487
    %v574 = vpack.c.b16 %v490, %v488
    %v575 = vpack.c.b16 %v493, %v491
    %v576 = vpack.c.b16 %v494, %v492
    %v577 = vpack.c.b16 %v497, %v495
    %v578 = vpack.c.b16 %v498, %v496
    %v579 = vpack.c.b16 %v501, %v499
    %v580 = vpack.c.b16 %v502, %v500
    %v581 = vpack.c.b16 %v505, %v503
    %v582 = vpack.c.b16 %v506, %v504
    %v583 = vpack.c.b16 %v509, %v507
    %v584 = vpack.c.b16 %v510, %v508
    %v585 = vpack.c.b16 %v513, %v511
    %v586 = vpack.c.b16 %v514, %v512
    %v587 = vpack.c.b16 %v517, %v515
    %v588 = vpack.c.b16 %v518, %v516
    %v589 = vpack.c.b16 %v521, %v519
    %v590 = vpack.c.b16 %v522, %v520
    %v591 = vpack.c.b16 %v525, %v523
    %v592 = vpack.c.b16 %v526, %v524
    %v593 = vpack.c.b16 %v529, %v527
    %v594 = vpack.c.b16 %v530, %v528
    %659 = vmatpush.bf16.msra.mxu0 %v545
    %660 = vmatpush.bf16.msra.mxu0 %v543
    %661 = vmatpush.bf16.msra.mxu0 %v541
    %662 = vmatpush.bf16.msra.mxu0 %v539
    %663 = vmatpush.bf16.msra.mxu0 %v537
    %664 = vmatpush.bf16.msra.mxu0 %v535
    %665 = vmatpush.bf16.msra.mxu0 %v533
    %666 = vmatpush.bf16.msra.mxu0 %v531
    %667 = vmatmul.bf16.gmra.mxu0 %v226
    %v668 = vpop.f32.mrf.mxu0
    %v669 = vadd.f32 %v323, %v668
    %v670 = vpop.f32.mrf.mxu0
    %671 = vdwg.mxu0
    %672 = vmatpush.bf16.msra.mxu0 %v561
    %673 = vmatpush.bf16.msra.mxu0 %v559
    %674 = vmatpush.bf16.msra.mxu0 %v557
    %675 = vmatpush.bf16.msra.mxu0 %v555
    %676 = vmatpush.bf16.msra.mxu0 %v553
    %677 = vmatpush.bf16.msra.mxu0 %v551
    %678 = vmatpush.bf16.msra.mxu0 %v549
    %679 = vmatpush.bf16.msra.mxu0 %v547
    %680 = vmatmul.bf16.gmra.mxu0 %v227
    %v681 = vpop.f32.mrf.mxu0
    %v682 = vadd.f32 %v669, %v681
    %v683 = vpop.f32.mrf.mxu0
    %684 = vdwg.mxu0
    %685 = vmatpush.bf16.msra.mxu0 %v577
    %686 = vmatpush.bf16.msra.mxu0 %v575
    %687 = vmatpush.bf16.msra.mxu0 %v573
    %688 = vmatpush.bf16.msra.mxu0 %v571
    %689 = vmatpush.bf16.msra.mxu0 %v569
    %690 = vmatpush.bf16.msra.mxu0 %v567
    %691 = vmatpush.bf16.msra.mxu0 %v565
    %692 = vmatpush.bf16.msra.mxu0 %v563
    %693 = vmatmul.bf16.gmra.mxu0 %v228
    %v694 = vpop.f32.mrf.mxu0
    %v695 = vadd.f32 %v682, %v694
    %v696 = vpop.f32.mrf.mxu0
    %697 = vdwg.mxu0
    %698 = vmatpush.bf16.msra.mxu0 %v593
    %699 = vmatpush.bf16.msra.mxu0 %v591
    %700 = vmatpush.bf16.msra.mxu0 %v589
    %701 = vmatpush.bf16.msra.mxu0 %v587
    %702 = vmatpush.bf16.msra.mxu0 %v585
    %703 = vmatpush.bf16.msra.mxu0 %v583
    %704 = vmatpush.bf16.msra.mxu0 %v581
    %705 = vmatpush.bf16.msra.mxu0 %v579
    %706 = vmatmul.bf16.gmra.mxu0 %v229
    %v707 = vpop.f32.mrf.mxu0
    %v708 = vadd.f32 %v695, %v707
    %v709 = vpop.f32.mrf.mxu0
    %710 = vdwg.mxu0
    %711 = vmatpush.bf16.msra.mxu0 %v546
    %712 = vmatpush.bf16.msra.mxu0 %v544
    %713 = vmatpush.bf16.msra.mxu0 %v542
    %714 = vmatpush.bf16.msra.mxu0 %v540
    %715 = vmatpush.bf16.msra.mxu0 %v538
    %716 = vmatpush.bf16.msra.mxu0 %v536
    %717 = vmatpush.bf16.msra.mxu0 %v534
    %718 = vmatpush.bf16.msra.mxu0 %v532
    %719 = vmatmul.bf16.gmra.mxu0 %v226
    %v720 = vpop.f32.mrf.mxu0
    %v721 = vadd.f32 %v336, %v720
    %v722 = vpop.f32.mrf.mxu0
    %723 = vdwg.mxu0
    %724 = vmatpush.bf16.msra.mxu0 %v562
    %725 = vmatpush.bf16.msra.mxu0 %v560
    %726 = vmatpush.bf16.msra.mxu0 %v558
    %727 = vmatpush.bf16.msra.mxu0 %v556
    %728 = vmatpush.bf16.msra.mxu0 %v554
    %729 = vmatpush.bf16.msra.mxu0 %v552
    %730 = vmatpush.bf16.msra.mxu0 %v550
    %731 = vmatpush.bf16.msra.mxu0 %v548
    %732 = vmatmul.bf16.gmra.mxu0 %v227
    %v733 = vpop.f32.mrf.mxu0
    %v734 = vadd.f32 %v721, %v733
    %v735 = vpop.f32.mrf.mxu0
    %736 = vdwg.mxu0
    %737 = vmatpush.bf16.msra.mxu0 %v578
    %738 = vmatpush.bf16.msra.mxu0 %v576
    %739 = vmatpush.bf16.msra.mxu0 %v574
    %740 = vmatpush.bf16.msra.mxu0 %v572
    %741 = vmatpush.bf16.msra.mxu0 %v570
    %742 = vmatpush.bf16.msra.mxu0 %v568
    %743 = vmatpush.bf16.msra.mxu0 %v566
    %744 = vmatpush.bf16.msra.mxu0 %v564
    %745 = vmatmul.bf16.gmra.mxu0 %v228
    %v746 = vpop.f32.mrf.mxu0
    %v747 = vadd.f32 %v734, %v746
    %v748 = vpop.f32.mrf.mxu0
    %749 = vdwg.mxu0
    %750 = vmatpush.bf16.msra.mxu0 %v594
    %751 = vmatpush.bf16.msra.mxu0 %v592
    %752 = vmatpush.bf16.msra.mxu0 %v590
    %753 = vmatpush.bf16.msra.mxu0 %v588
    %754 = vmatpush.bf16.msra.mxu0 %v586
    %755 = vmatpush.bf16.msra.mxu0 %v584
    %756 = vmatpush.bf16.msra.mxu0 %v582
    %757 = vmatpush.bf16.msra.mxu0 %v580
    %758 = vmatmul.bf16.gmra.mxu0 %v229
    %v759 = vpop.f32.mrf.mxu0
    %v760 = vadd.f32 %v747, %v759
    %v761 = vpop.f32.mrf.mxu0
    %762 = vdwg.mxu0
    %v763 = vld [vmem:[%s6] sm:$0x3]
    %v765 = vperm.slane %v763, 0
    %v766 = vperm.slane %v763, 1
    %v769 = vadd.f32 %v708, %v765
    %v770 = vadd.f32 %v760, %v766
    %v771 = vmax.f32 %v769, 0.0
    %v772 = vmax.f32 %v770, 0.0
    %v773 = vld [vmem:[%s7] sm:$0x3]
    %v775 = vperm.slane %v773, 0
    %v776 = vperm.slane %v773, 1
    %v779 = vmul.f32 %v771, %v775
    %v780 = vmul.f32 %v772, %v776
    %v781 = vadd.f32 %v779, %v780
    %782 = vadd.xlane.f32.xlu0 %v781
    %v783 = vpop.xlane.xlu0 %782
    %s784 = sld [smem:[#allocation2]]
    %v785 = vstv %s784
    %v786 = vadd.f32 %v783, %v785
    %vm787 = vcmask 7168
    %788 = vst.msk [vmem:[%s9] sm:$0xff] %vm787, %v786
    // Predicated region
    $region58: #{tpu_custom_call.1} parent=1 // pred_check
      _
    $region59: #{tpu_custom_call.1} parent=1 // pred_check_branch
      %790 = sbr.rel (0) target = $region61
    $region60: #{tpu_custom_call.1} parent=1 // pred_region
      _
    $region61: #{tpu_custom_call.1} parent=1 // pred_fallthru
      _
    // Predicated region
    $region62: #{tpu_custom_call.1} parent=1 // pred_check
      _
    $region63: #{tpu_custom_call.1} parent=1 // pred_check_branch
      %792 = sbr.rel (0) target = $region65
    $region64: #{tpu_custom_call.1} parent=1 // pred_region
      _
    $region65: #{tpu_custom_call.1} parent=1 // pred_fallthru
      _
    %793 = vsyncpa [#allocation4], 1
    %794 = vsyncpa [#allocation6], 1
    %795 = vsyncpa [#allocation9], 1

</llo_original>
